<compile_context>
chip_gen: v5e
topology: v5e:2x2
jax: 0.10.0
libtpu: 0.0.40
codegen_flags: <defaults>
</compile_context>

<pallas_src>
import functools

import jax
import jax.numpy as jnp
from jax.experimental import pallas as pl
from jax.experimental.pallas import tpu as pltpu

BIT_COUNT = 8
OH = 2 ** BIT_COUNT  # 256


def _soft_xor_kernel(x_ref, wab_ref, tbl_aug_ref, rhs_ref, o_ref):
    x = x_ref[...]               # (tn, D)    bf16
    wab = wab_ref[...]           # (D, 2*OH)  bf16, fused [Wa^T | Wb^T]
    tbl_aug = tbl_aug_ref[...]   # (OH, 9)    f32, [oh->bits table | ones]
    rhs = rhs_ref[...]           # (16, OH)   f32, [table^T ; ones]

    # Single bf16 MXU pass for both predictors (K=D underfills the MXU, so the
    # issue/fill cost is paid once); accumulate in f32.
    logits = jnp.dot(x, wab, preferred_element_type=jnp.float32)   # (tn, 512) f32

    def soft_bits(z):
        # softmax(z) @ table, with the normalization folded into the tiny dot:
        #   e = exp(z - max), s = e @ [table | 1]  ->  bits = s[:, :8] / s[:, 8]
        m = jnp.max(z, axis=-1, keepdims=True)                       # XLU
        e = jnp.exp(z - m)                                           # EUP (dominant)
        s = jnp.dot(e, tbl_aug, preferred_element_type=jnp.float32)  # (tn, 9)
        inv = pl.reciprocal(s[:, BIT_COUNT:], approx=True)           # (tn, 1) EUP
        return s[:, :BIT_COUNT] * inv                                # (tn, 8)

    a_bits = soft_bits(logits[:, :OH])
    b_bits = soft_bits(logits[:, OH:])
    xor_bits = a_bits * (1.0 - b_bits) + (1.0 - a_bits) * b_bits     # (tn, 8)

    # log( prod_bit p^t (1-p)^(1-t) ) = [log p - log(1-p), log(1-p)] @ [t^T; 1]
    # Clamp p and 1-p away from 0 so log stays finite (0 * -inf -> NaN guard).
    eps = 1e-30
    lp = jnp.log(jnp.maximum(xor_bits, eps))                         # (tn, 8)
    lq = jnp.log(jnp.maximum(1.0 - xor_bits, eps))                   # (tn, 8)
    lhs = jnp.concatenate([lp - lq, lq], axis=-1)                    # (tn, 16)

    o_ref[...] = jnp.dot(lhs, rhs, preferred_element_type=jnp.float32)


def _round_up(x, m):
    return (x + m - 1) // m * m


@functools.partial(jax.jit, static_argnames=("tile_n",))
def soft_xor_forward(x, wab, tbl_aug, rhs_final, *, tile_n=1024):
    """x: (N, D) f32; wab: (D, 2*OH) fused [Wa^T | Wb^T]; returns (N, OH) f32."""
    N, D = x.shape

    # bf16 MXU operands (accumulation stays f32 via preferred_element_type).
    x = x.astype(jnp.bfloat16)
    wab = wab.astype(jnp.bfloat16)

    # Large N-tile to amortize per-step pipeline overhead, but guarantee >= 2
    # grid steps whenever N > 8 so both v7x TensorCores are used. Keep the
    # tile a multiple of 8 (sublane tiling); partial last block handled by
    # Pallas (OOB reads garbage on independent rows, OOB writes dropped).
    tn = max(8, min(tile_n, _round_up(pl.cdiv(N, 2), 8)))
    grid = (pl.cdiv(N, tn),)
    vmem_limit = 64 * 1024 * 1024 if tn >= 1024 else None

    cost = pl.CostEstimate(
        flops=2 * N * D * (2 * OH)                      # logits matmul
              + 2 * (2 * N * OH * (BIT_COUNT + 1))      # two bits dots
              + 2 * N * (2 * BIT_COUNT) * OH,           # final dot
        transcendentals=N * (2 * OH + 2 * BIT_COUNT + 2),
        bytes_accessed=N * D * 2 + D * (2 * OH) * 2
                       + OH * (BIT_COUNT + 1) * 4 + (2 * BIT_COUNT) * OH * 4
                       + N * OH * 4,
    )

    return pl.pallas_call(
        _soft_xor_kernel,
        out_shape=jax.ShapeDtypeStruct((N, OH), jnp.float32),
        grid_spec=pltpu.PrefetchScalarGridSpec(
            num_scalar_prefetch=0,
            grid=grid,
            in_specs=[
                pl.BlockSpec((tn, D), lambda i: (i, 0)),
                pl.BlockSpec((D, 2 * OH), lambda i: (0, 0)),
                pl.BlockSpec((OH, BIT_COUNT + 1), lambda i: (0, 0)),
                pl.BlockSpec((2 * BIT_COUNT, OH), lambda i: (0, 0)),
            ],
            out_specs=pl.BlockSpec((tn, OH), lambda i: (i, 0)),
        ),
        compiler_params=pltpu.CompilerParams(
            dimension_semantics=("parallel",),
            vmem_limit_bytes=vmem_limit),
        cost_estimate=cost,
    )(x, wab, tbl_aug, rhs_final)


def make_oh_to_bits_table(bit_count=BIT_COUNT):
    oh = jnp.arange(2 ** bit_count, dtype=jnp.int32)[:, None]
    bits = jnp.arange(bit_count, dtype=jnp.int32)[None, :]
    return ((oh >> bits) & 1).astype(jnp.float32)  # (2^bits, bits)


def make_soft_xor_params(wa, wb, tbl):
    """Precompute kernel-side constants from the nn.Linear weights + table."""
    wab = jnp.concatenate([wa.T, wb.T], axis=1).astype(jnp.bfloat16)        # (D, 512)
    tbl_aug = jnp.concatenate(
        [tbl, jnp.ones((OH, 1), jnp.float32)], axis=1)                      # (256, 9)
    rhs_final = jnp.concatenate(
        [tbl.T, jnp.ones((BIT_COUNT, OH), jnp.float32)], axis=0)            # (16, 256)
    return wab, tbl_aug, rhs_final


def xavier_uniform(key, out_dim, in_dim):
    bound = (6.0 / (in_dim + out_dim)) ** 0.5
    return jax.random.uniform(key, (out_dim, in_dim), jnp.float32, -bound, bound)


def reference_forward(x, wa, wb, tbl):
    # Pure-JAX f32 reference mirroring the PyTorch module.
    def softmax(z):
        z = z - jnp.max(z, axis=-1, keepdims=True)
        e = jnp.exp(z)
        return e / jnp.sum(e, axis=-1, keepdims=True)

    sa = softmax(x @ wa.T)
    sb = softmax(x @ wb.T)
    a_bits = sa @ tbl
    b_bits = sb @ tbl
    xb = a_bits * (1 - b_bits) + (1 - a_bits) * b_bits          # (N, 8)
    xb = xb[:, None, :]                                         # (N, 1, 8)
    oh = jnp.prod(xb ** tbl * (1 - xb) ** (1 - tbl), axis=-1)   # (N, 256)
    return jnp.log(oh)


if __name__ == "__main__":
    key = jax.random.PRNGKey(0)
    kx, ka, kb, kx2 = jax.random.split(key, 4)

    D = 32                                   # input_dims
    wa = xavier_uniform(ka, OH, D)           # nn.Linear weight: (out=256, in=D)
    wb = xavier_uniform(kb, OH, D)
    tbl = make_oh_to_bits_table()            # (256, 8)
    wab, tbl_aug, rhs_final = make_soft_xor_params(wa, wb, tbl)

    # Tolerances reflect bf16 MXU operands for the logits matmul + approx
    # reciprocal in the (folded) softmax; accumulation is f32 throughout.
    RTOL = ATOL = 2e-2

    # Small demo batch.
    N = 16
    x = jax.random.normal(kx, (N, D), jnp.float32)
    out = jax.block_until_ready(soft_xor_forward(x, wab, tbl_aug, rhs_final))
    ref = reference_forward(x, wa, wb, tbl)
    assert out.shape == (N, OH)
    assert bool(jnp.all(jnp.isfinite(out)))
    assert jnp.allclose(out, ref, rtol=RTOL, atol=ATOL), "mismatch vs JAX reference"

    # Ragged batch: exercises the multi-step grid with a clipped partial last
    # block (no host-side pad, no output slice).
    N2 = 300
    x2 = jax.random.normal(kx2, (N2, D), jnp.float32)
    out2 = jax.block_until_ready(soft_xor_forward(x2, wab, tbl_aug, rhs_final))
    ref2 = reference_forward(x2, wa, wb, tbl)
    assert out2.shape == (N2, OH)
    assert bool(jnp.all(jnp.isfinite(out2)))
    assert jnp.allclose(out2, ref2, rtol=RTOL, atol=ATOL), "mismatch vs JAX reference (ragged)"

    print("KERNEL_OK")
</pallas_src>

<mosaic_0001>
module attributes {stable_mosaic.version = 11 : i64} {
  func.func @_soft_xor_kernel(%arg0: i32, %arg1: memref<8x32xbf16, #tpu.memory_space<vmem>>, %arg2: memref<32x512xbf16, #tpu.memory_space<vmem>>, %arg3: memref<256x9xf32, #tpu.memory_space<vmem>>, %arg4: memref<16x256xf32, #tpu.memory_space<vmem>>, %arg5: memref<8x256xf32, #tpu.memory_space<vmem>>) attributes {dimension_semantics = [#tpu.dimension_semantics<parallel>], iteration_bounds = array<i64: 2>, scalar_prefetch = 0 : i64, scratch_operands = 0 : i64, tpu.core_type = #tpu.core_type<tc>, window_params = [{transform_indices = @transform_0, window_bounds = array<i64: 8, 32>}, {pipeline_mode = #tpu.pipeline_mode<synchronous>, transform_indices = @transform_1, window_bounds = array<i64: 32, 512>}, {pipeline_mode = #tpu.pipeline_mode<synchronous>, transform_indices = @transform_2, window_bounds = array<i64: 256, 9>}, {pipeline_mode = #tpu.pipeline_mode<synchronous>, transform_indices = @transform_3, window_bounds = array<i64: 16, 256>}, {transform_indices = @transform_4, window_bounds = array<i64: 8, 256>}]} {
    %c0 = arith.constant 0 : index
    %c0_0 = arith.constant 0 : index
    %0 = vector.load %arg1[%c0, %c0_0] : memref<8x32xbf16, #tpu.memory_space<vmem>>, vector<8x32xbf16>
    %c0_1 = arith.constant 0 : index
    %c0_2 = arith.constant 0 : index
    %1 = vector.load %arg2[%c0_1, %c0_2] : memref<32x512xbf16, #tpu.memory_space<vmem>>, vector<32x512xbf16>
    %c0_3 = arith.constant 0 : index
    %c0_4 = arith.constant 0 : index
    %2 = vector.load %arg3[%c0_3, %c0_4] : memref<256x9xf32, #tpu.memory_space<vmem>>, vector<256x9xf32>
    %c0_5 = arith.constant 0 : index
    %c0_6 = arith.constant 0 : index
    %3 = vector.load %arg4[%c0_5, %c0_6] : memref<16x256xf32, #tpu.memory_space<vmem>>, vector<16x256xf32>
    %cst = arith.constant dense<0.000000e+00> : vector<8x512xf32>
    %4 = tpu.matmul %0, %1, %cst {dimension_numbers = #tpu.dot_dimension_numbers<[1], [0], [0], [1], [0, 0, 1, 1], [], []>} : vector<8x32xbf16>, vector<32x512xbf16>, vector<8x512xf32> -> vector<8x512xf32>
    %5 = vector.extract_strided_slice %4 {offsets = [0, 0], sizes = [8, 256], strides = [1, 1]} : vector<8x512xf32> to vector<8x256xf32>
    %cst_7 = arith.constant dense<0xFF800000> : vector<8xf32>
    %6 = vector.multi_reduction <maximumf>, %5, %cst_7 [1] : vector<8x256xf32> to vector<8xf32>
    %7 = vector.shape_cast %6 : vector<8xf32> to vector<8x1xf32>
    %8 = vector.broadcast %7 : vector<8x1xf32> to vector<8x256xf32>
    %9 = arith.subf %5, %8 : vector<8x256xf32>
    %10 = math.exp %9 : vector<8x256xf32>
    %cst_8 = arith.constant dense<0.000000e+00> : vector<8x9xf32>
    %11 = tpu.matmul %10, %2, %cst_8 {dimension_numbers = #tpu.dot_dimension_numbers<[1], [0], [0], [1], [0, 0, 1, 1], [], []>} : vector<8x256xf32>, vector<256x9xf32>, vector<8x9xf32> -> vector<8x9xf32>
    %12 = vector.extract_strided_slice %11 {offsets = [0, 8], sizes = [8, 1], strides = [1, 1]} : vector<8x9xf32> to vector<8x1xf32>
    %13 = tpu.reciprocal %12 {approx = true} : vector<8x1xf32> -> vector<8x1xf32>
    %14 = vector.extract_strided_slice %11 {offsets = [0, 0], sizes = [8, 8], strides = [1, 1]} : vector<8x9xf32> to vector<8x8xf32>
    %15 = vector.broadcast %13 : vector<8x1xf32> to vector<8x8xf32>
    %16 = arith.mulf %14, %15 : vector<8x8xf32>
    %17 = vector.extract_strided_slice %4 {offsets = [0, 256], sizes = [8, 256], strides = [1, 1]} : vector<8x512xf32> to vector<8x256xf32>
    %cst_9 = arith.constant dense<0xFF800000> : vector<8xf32>
    %18 = vector.multi_reduction <maximumf>, %17, %cst_9 [1] : vector<8x256xf32> to vector<8xf32>
    %19 = vector.shape_cast %18 : vector<8xf32> to vector<8x1xf32>
    %20 = vector.broadcast %19 : vector<8x1xf32> to vector<8x256xf32>
    %21 = arith.subf %17, %20 : vector<8x256xf32>
    %22 = math.exp %21 : vector<8x256xf32>
    %cst_10 = arith.constant dense<0.000000e+00> : vector<8x9xf32>
    %23 = tpu.matmul %22, %2, %cst_10 {dimension_numbers = #tpu.dot_dimension_numbers<[1], [0], [0], [1], [0, 0, 1, 1], [], []>} : vector<8x256xf32>, vector<256x9xf32>, vector<8x9xf32> -> vector<8x9xf32>
    %24 = vector.extract_strided_slice %23 {offsets = [0, 8], sizes = [8, 1], strides = [1, 1]} : vector<8x9xf32> to vector<8x1xf32>
    %25 = tpu.reciprocal %24 {approx = true} : vector<8x1xf32> -> vector<8x1xf32>
    %26 = vector.extract_strided_slice %23 {offsets = [0, 0], sizes = [8, 8], strides = [1, 1]} : vector<8x9xf32> to vector<8x8xf32>
    %27 = vector.broadcast %25 : vector<8x1xf32> to vector<8x8xf32>
    %28 = arith.mulf %26, %27 : vector<8x8xf32>
    %cst_11 = arith.constant 1.000000e+00 : f32
    %29 = vector.broadcast %cst_11 : f32 to vector<8x8xf32>
    %30 = arith.subf %29, %28 : vector<8x8xf32>
    %31 = arith.mulf %16, %30 : vector<8x8xf32>
    %cst_12 = arith.constant 1.000000e+00 : f32
    %32 = vector.broadcast %cst_12 : f32 to vector<8x8xf32>
    %33 = arith.subf %32, %16 : vector<8x8xf32>
    %34 = arith.mulf %33, %28 : vector<8x8xf32>
    %35 = arith.addf %31, %34 : vector<8x8xf32>
    %cst_13 = arith.constant 1.000000e-30 : f32
    %36 = vector.broadcast %cst_13 : f32 to vector<8x8xf32>
    %37 = arith.maximumf %35, %36 : vector<8x8xf32>
    %38 = math.log %37 : vector<8x8xf32>
    %cst_14 = arith.constant 1.000000e+00 : f32
    %39 = vector.broadcast %cst_14 : f32 to vector<8x8xf32>
    %40 = arith.subf %39, %35 : vector<8x8xf32>
    %cst_15 = arith.constant 1.000000e-30 : f32
    %41 = vector.broadcast %cst_15 : f32 to vector<8x8xf32>
    %42 = arith.maximumf %40, %41 : vector<8x8xf32>
    %43 = math.log %42 : vector<8x8xf32>
    %44 = arith.subf %38, %43 : vector<8x8xf32>
    %45 = tpu.concatenate %44, %43 in 1 : vector<8x8xf32>, vector<8x8xf32> -> vector<8x16xf32>
    %cst_16 = arith.constant dense<0.000000e+00> : vector<8x256xf32>
    %46 = tpu.matmul %45, %3, %cst_16 {dimension_numbers = #tpu.dot_dimension_numbers<[1], [0], [0], [1], [0, 0, 1, 1], [], []>} : vector<8x16xf32>, vector<16x256xf32>, vector<8x256xf32> -> vector<8x256xf32>
    %c0_17 = arith.constant 0 : index
    %c0_18 = arith.constant 0 : index
    %47 = vector.load %arg5[%c0_17, %c0_18] : memref<8x256xf32, #tpu.memory_space<vmem>>, vector<8x256xf32>
    tpu.vector_store %arg5[%c0_17, %c0_18], %46 {strides = array<i32>} : memref<8x256xf32, #tpu.memory_space<vmem>>, vector<8x256xf32>,
    return
  }
  func.func @transform_0(%arg0: i32) -> (i32, i32) {
    %c0_i32 = arith.constant 0 : i32
    %c0_i32_0 = arith.constant 0 : i32
    return %arg0, %c0_i32 : i32, i32
  }
  func.func @transform_1(%arg0: i32) -> (i32, i32) {
    %c0_i32 = arith.constant 0 : i32
    %c0_i32_0 = arith.constant 0 : i32
    %c0_i32_1 = arith.constant 0 : i32
    return %c0_i32, %c0_i32_0 : i32, i32
  }
  func.func @transform_2(%arg0: i32) -> (i32, i32) {
    %c0_i32 = arith.constant 0 : i32
    %c0_i32_0 = arith.constant 0 : i32
    %c0_i32_1 = arith.constant 0 : i32
    return %c0_i32, %c0_i32_0 : i32, i32
  }
  func.func @transform_3(%arg0: i32) -> (i32, i32) {
    %c0_i32 = arith.constant 0 : i32
    %c0_i32_0 = arith.constant 0 : i32
    %c0_i32_1 = arith.constant 0 : i32
    return %c0_i32, %c0_i32_0 : i32, i32
  }
  func.func @transform_4(%arg0: i32) -> (i32, i32) {
    %c0_i32 = arith.constant 0 : i32
    %c0_i32_0 = arith.constant 0 : i32
    return %arg0, %c0_i32 : i32, i32
  }
}

</mosaic_0001>

<llo_original>
// kernel: soft_xor_forward.1
$region0: #{soft_xor_forward.1}
  #allocation0 [shape = 'u32[]', space=smem, size = 0x4, offset = 0x4, fixed_abs, tag = 'smem constant byte address 0x4 - core index']
  #allocation1 [shape = 'u32[72,128]{1,0:T(1,128)}', space=vmem, size = 0x9000, scoped, tag = 'internal scratch']
  %s0 = inlined_call_operand.vmem [shape: bf16[16,32], index: 0, kind: input, shape index: {}]
  %s1 = inlined_call_operand.vmem [shape: bf16[32,512], index: 1, kind: input, shape index: {}]
  %s2 = inlined_call_operand.vmem [shape: f32[256,9], index: 2, kind: input, shape index: {}]
  %s3 = inlined_call_operand.vmem [shape: f32[16,256], index: 3, kind: input, shape index: {}]
  %s4 = inlined_call_operand.hbm [shape: f32[16,256], index: 4, kind: output, shape index: {}]
  %s5 = sld [smem:[#allocation0]]
  $region49: #{soft_xor_forward.1} parent=0
    _
  %s7 = ssub.s32 1, %s5
  %s8 = scalar_select 0, %s7, %s5
  $region1: #{soft_xor_forward.1} parent=0
    #allocation2 [shape = 'u8[16384]{0}', space=vmem, size = 0x4000, scoped, tag = 'output window, operand 0']
    #allocation3 [shape = 's32[2]{0}', space=sflag, size = 0x8, scoped, tag = 'scoped memory for soft_xor_forward.1']
    %9 = vsyncpa [#allocation3], 0
    %s10 = scalar_lea.sflag [#allocation3], 1
    %11 = vsyncpa %s10, 0
    loop: start=0, step=1, limit=4
    $region2: #{soft_xor_forward.1} parent=1 // loop_pre_header
      _
    $region3: #{soft_xor_forward.1} parent=1 // loop_header
      %s13 = sphi 0, %s17
      %p14 = scmp.ge.s32.totalorder %s13, 4
      %s23 = sphi 0, %s25
      %s26 = sphi 0, %s23
      %s27 = sphi 0, %s26
      %s43 = sphi 0, %s27
      %s47 = sphi 0, %s47
      %s49 = sphi 0, %s47
      %s50 = sphi 0, %s49
      %s64 = sphi 0, %s50
      %s68 = sphi 0, %s68
      %s70 = sphi 0, %s68
      %s71 = sphi 0, %s70
      %s85 = sphi 0, %s71
      %s89 = sphi 0, %s89
      %s91 = sphi 0, %s89
      %s92 = sphi 0, %s91
      %s106 = sphi 0, %s92
      %s112 = sphi 0, %s114
      %s115 = sphi 0, %s112
      %s116 = sphi 0, %s115
      %s132 = sphi 0, %s116
    $region4: #{soft_xor_forward.1} parent=1 // loop_header_branch
      %16 = sbr.rel (%p14) target = $region8
    $region5: #{soft_xor_forward.1} parent=1 // loop_body
      %s18 = ssub.s32 %s13, 1
      %s19 = ssub.s32 %s13, 2
      %s20 = sadd.s32 %s13, 1
      %s21 = ssub.s32 %s13, %s20
      %p22 = scmp.eq.s32.totalorder %s21, 0
      %s24 = sadd.s32 %s23, 1
      %s25 = scalar_select %p22, %s23, %s24
      %p28 = pneg %p22
      %p29 = scmp.eq.s32.totalorder %s13, 1
      %p30 = por %p28, %p29
      %p31 = scmp.ne.s32.totalorder %s23, %s26
      %p32 = scmp.eq.s32.totalorder %s13, 0
      %p33 = por %p31, %p32
      %p34 = scmp.ne.s32.totalorder %s23, %s26
      %p35 = scmp.eq.s32.totalorder %s18, 1
      %p36 = por %p34, %p35
      %p37 = scmp.ne.s32.totalorder %s26, %s27
      %p38 = scmp.eq.s32.totalorder %s18, 0
      %p39 = por %p37, %p38
      %p40 = scmp.ne.s32.totalorder %s26, %s27
      %p41 = scmp.eq.s32.totalorder %s19, 1
      %p42 = por %p40, %p41
      %p44 = scmp.ne.s32.totalorder %s27, %s43
      %p45 = scmp.eq.s32.totalorder %s19, 0
      %p46 = por %p44, %p45
      %s48 = sadd.s32 %s47, 1
      %p51 = scmp.eq.s32.totalorder %s13, 1
      %p52 = scmp.ne.s32.totalorder %s47, %s49
      %p53 = scmp.eq.s32.totalorder %s13, 0
      %p54 = por %p52, %p53
      %p55 = scmp.ne.s32.totalorder %s47, %s49
      %p56 = scmp.eq.s32.totalorder %s18, 1
      %p57 = por %p55, %p56
      %p58 = scmp.ne.s32.totalorder %s49, %s50
      %p59 = scmp.eq.s32.totalorder %s18, 0
      %p60 = por %p58, %p59
      %p61 = scmp.ne.s32.totalorder %s49, %s50
      %p62 = scmp.eq.s32.totalorder %s19, 1
      %p63 = por %p61, %p62
      %p65 = scmp.ne.s32.totalorder %s50, %s64
      %p66 = scmp.eq.s32.totalorder %s19, 0
      %p67 = por %p65, %p66
      %s69 = sadd.s32 %s68, 1
      %p72 = scmp.eq.s32.totalorder %s13, 1
      %p73 = scmp.ne.s32.totalorder %s68, %s70
      %p74 = scmp.eq.s32.totalorder %s13, 0
      %p75 = por %p73, %p74
      %p76 = scmp.ne.s32.totalorder %s68, %s70
      %p77 = scmp.eq.s32.totalorder %s18, 1
      %p78 = por %p76, %p77
      %p79 = scmp.ne.s32.totalorder %s70, %s71
      %p80 = scmp.eq.s32.totalorder %s18, 0
      %p81 = por %p79, %p80
      %p82 = scmp.ne.s32.totalorder %s70, %s71
      %p83 = scmp.eq.s32.totalorder %s19, 1
      %p84 = por %p82, %p83
      %p86 = scmp.ne.s32.totalorder %s71, %s85
      %p87 = scmp.eq.s32.totalorder %s19, 0
      %p88 = por %p86, %p87
      %s90 = sadd.s32 %s89, 1
      %p93 = scmp.eq.s32.totalorder %s13, 1
      %p94 = scmp.ne.s32.totalorder %s89, %s91
      %p95 = scmp.eq.s32.totalorder %s13, 0
      %p96 = por %p94, %p95
      %p97 = scmp.ne.s32.totalorder %s89, %s91
      %p98 = scmp.eq.s32.totalorder %s18, 1
      %p99 = por %p97, %p98
      %p100 = scmp.ne.s32.totalorder %s91, %s92
      %p101 = scmp.eq.s32.totalorder %s18, 0
      %p102 = por %p100, %p101
      %p103 = scmp.ne.s32.totalorder %s91, %s92
      %p104 = scmp.eq.s32.totalorder %s19, 1
      %p105 = por %p103, %p104
      %p107 = scmp.ne.s32.totalorder %s92, %s106
      %p108 = scmp.eq.s32.totalorder %s19, 0
      %p109 = por %p107, %p108
      %s110 = ssub.s32 %s13, %s20
      %p111 = scmp.eq.s32.totalorder %s110, 0
      %s113 = sadd.s32 %s112, 1
      %s114 = scalar_select %p111, %s112, %s113
      %p117 = pneg %p111
      %p118 = scmp.eq.s32.totalorder %s13, 1
      %p119 = por %p117, %p118
      %p120 = scmp.ne.s32.totalorder %s112, %s115
      %p121 = scmp.eq.s32.totalorder %s13, 0
      %p122 = por %p120, %p121
      %p123 = scmp.ne.s32.totalorder %s112, %s115
      %p124 = scmp.eq.s32.totalorder %s18, 1
      %p125 = por %p123, %p124
      %p126 = scmp.ne.s32.totalorder %s115, %s116
      %p127 = scmp.eq.s32.totalorder %s18, 0
      %p128 = por %p126, %p127
      %p129 = scmp.ne.s32.totalorder %s115, %s116
      %p130 = scmp.eq.s32.totalorder %s19, 1
      %p131 = por %p129, %p130
      %p133 = scmp.ne.s32.totalorder %s116, %s132
      %p134 = scmp.eq.s32.totalorder %s19, 0
      %p135 = por %p133, %p134
      %p136 = scmp.le.s32.totalorder 1, %s13
      %p137 = scmp.lt.s32.totalorder %s13, 3
      %p138 = pnand %p136, %p137
      %p139 = pneg %p138
      // Predicated region
      $region9: #{soft_xor_forward.1} parent=5 // pred_check
        _
      $region10: #{soft_xor_forward.1} parent=5 // pred_check_branch
        %141 = sbr.rel (%p138) target = $region12
      $region11: #{soft_xor_forward.1} parent=5 // pred_region
        %s142 = ssub.s32 %s13, 1
        // Predicated region
        $region13: #{soft_xor_forward.1} parent=11 // pred_check
          %p143 = pneg %p60
        $region14: #{soft_xor_forward.1} parent=11 // pred_check_branch
          %145 = sbr.rel (%p143) target = $region16
        $region15: #{soft_xor_forward.1} parent=11 // pred_region
          _
        $region16: #{soft_xor_forward.1} parent=11 // pred_fallthru
          _
        // Predicated region
        $region17: #{soft_xor_forward.1} parent=11 // pred_check
          %p146 = pneg %p81
        $region18: #{soft_xor_forward.1} parent=11 // pred_check_branch
          %148 = sbr.rel (%p146) target = $region20
        $region19: #{soft_xor_forward.1} parent=11 // pred_region
          _
        $region20: #{soft_xor_forward.1} parent=11 // pred_fallthru
          _
        // Predicated region
        $region21: #{soft_xor_forward.1} parent=11 // pred_check
          %p149 = pneg %p102
        $region22: #{soft_xor_forward.1} parent=11 // pred_check_branch
          %151 = sbr.rel (%p149) target = $region24
        $region23: #{soft_xor_forward.1} parent=11 // pred_region
          _
        $region24: #{soft_xor_forward.1} parent=11 // pred_fallthru
          _
      $region12: #{soft_xor_forward.1} parent=5 // pred_fallthru
        _
      %p152 = scmp.lt.s32.totalorder %s13, 2
      // Predicated region
      $region25: #{soft_xor_forward.1} parent=5 // pred_check
        %p153 = pneg %p152
      $region26: #{soft_xor_forward.1} parent=5 // pred_check_branch
        %155 = sbr.rel (%p153) target = $region28
      $region27: #{soft_xor_forward.1} parent=5 // pred_region
        // Predicated region
        $region29: #{soft_xor_forward.1} parent=27 // pred_check
          %p156 = pneg %p33
        $region30: #{soft_xor_forward.1} parent=27 // pred_check_branch
          %158 = sbr.rel (%p156) target = $region32
        $region31: #{soft_xor_forward.1} parent=27 // pred_region
          %p159 = scmp.lt.s32.totalorder %s13, 1
          %s160 = scalar_select %p159, %s13, 1
          %s161 = smul.addr %s160, 4
          %s162 = scalar_lea.vmem %s0, %s161
        $region32: #{soft_xor_forward.1} parent=27 // pred_fallthru
          _
      $region28: #{soft_xor_forward.1} parent=5 // pred_fallthru
        _
      %p163 = scmp.le.s32.totalorder 1, %s13
      %p164 = scmp.lt.s32.totalorder %s13, 3
      %p165 = pnand %p163, %p164
      %p166 = pneg %p165
      // Predicated region
      $region33: #{soft_xor_forward.1} parent=5 // pred_check
        _
      $region34: #{soft_xor_forward.1} parent=5 // pred_check_branch
        %168 = sbr.rel (%p165) target = $region36
      $region35: #{soft_xor_forward.1} parent=5 // pred_region
        %s169 = ssub.s32 %s13, 1
        %p170 = scmp.lt.s32.totalorder %s18, 1
        %s171 = scalar_select %p170, %s18, 1
        %s172 = smul.addr %s171, 4
        %s173 = scalar_lea.vmem %s0, %s172
        %p174 = pneg %p39
        %p175 = pneg %p36
        %p176 = pneg %p60
        %p177 = pneg %p57
        %p178 = pneg %p81
        %p179 = pneg %p78
        %p180 = pneg %p102
        %p181 = pneg %p99
        %p182 = pneg %p128
        %p183 = pneg %p125
        %s184 = sand.u32 %s115, 1
        %s185 = scalar_lea.sflag [#allocation3], %s184
        %s186 = sand.u32 %s115, 1
        %s187 = smul.addr %s186, 16
        %s188 = scalar_lea.vmem [#allocation2], %s187
        %p189 = scmp.lt.s32.totalorder %s18, 1
        %s190 = scalar_select %p189, %s18, 1
        %s191 = smul.addr %s190, 4
        %s192 = scalar_lea.vmem %s0, %s191
        %v194 = vld [vmem:[%s192] sm:$0xf]
        %v195 = vld [vmem:[%s1] sm:$0xff]
        %v196 = vld [vmem:[%s1 + $0x8] sm:$0xff]
        %v197 = vld [vmem:[%s1 + $0x10] sm:$0xff]
        %v198 = vld [vmem:[%s1 + $0x18] sm:$0xff]
        %v199 = vld [vmem:[%s1 + $0x20] sm:$0xff]
        %v200 = vld [vmem:[%s1 + $0x28] sm:$0xff]
        %v201 = vld [vmem:[%s1 + $0x30] sm:$0xff]
        %v202 = vld [vmem:[%s1 + $0x38] sm:$0xff]
        %v203 = vld [vmem:[%s2] sm:$0xff]
        %v204 = vld [vmem:[%s2 + $0x8] sm:$0xff]
        %v205 = vld [vmem:[%s2 + $0x10] sm:$0xff]
        %v206 = vld [vmem:[%s2 + $0x18] sm:$0xff]
        %v207 = vld [vmem:[%s2 + $0x20] sm:$0xff]
        %v208 = vld [vmem:[%s2 + $0x28] sm:$0xff]
        %v209 = vld [vmem:[%s2 + $0x30] sm:$0xff]
        %v210 = vld [vmem:[%s2 + $0x38] sm:$0xff]
        %v211 = vld [vmem:[%s2 + $0x40] sm:$0xff]
        %v212 = vld [vmem:[%s2 + $0x48] sm:$0xff]
        %v213 = vld [vmem:[%s2 + $0x50] sm:$0xff]
        %v214 = vld [vmem:[%s2 + $0x58] sm:$0xff]
        %v215 = vld [vmem:[%s2 + $0x60] sm:$0xff]
        %v216 = vld [vmem:[%s2 + $0x68] sm:$0xff]
        %v217 = vld [vmem:[%s2 + $0x70] sm:$0xff]
        %v218 = vld [vmem:[%s2 + $0x78] sm:$0xff]
        %v219 = vld [vmem:[%s2 + $0x80] sm:$0xff]
        %v220 = vld [vmem:[%s2 + $0x88] sm:$0xff]
        %v221 = vld [vmem:[%s2 + $0x90] sm:$0xff]
        %v222 = vld [vmem:[%s2 + $0x98] sm:$0xff]
        %v223 = vld [vmem:[%s2 + $0xa0] sm:$0xff]
        %v224 = vld [vmem:[%s2 + $0xa8] sm:$0xff]
        %v225 = vld [vmem:[%s2 + $0xb0] sm:$0xff]
        %v226 = vld [vmem:[%s2 + $0xb8] sm:$0xff]
        %v227 = vld [vmem:[%s2 + $0xc0] sm:$0xff]
        %v228 = vld [vmem:[%s2 + $0xc8] sm:$0xff]
        %v229 = vld [vmem:[%s2 + $0xd0] sm:$0xff]
        %v230 = vld [vmem:[%s2 + $0xd8] sm:$0xff]
        %v231 = vld [vmem:[%s2 + $0xe0] sm:$0xff]
        %v232 = vld [vmem:[%s2 + $0xe8] sm:$0xff]
        %v233 = vld [vmem:[%s2 + $0xf0] sm:$0xff]
        %v234 = vld [vmem:[%s2 + $0xf8] sm:$0xff]
        %v235 = vld [vmem:[%s3] sm:$0xff]
        %v236 = vld [vmem:[%s3 + $0x8] sm:$0xff]
        %v237 = vld [vmem:[%s3 + $0x10] sm:$0xff]
        %v238 = vld [vmem:[%s3 + $0x18] sm:$0xff]
        %v247 = vunpack.c.l.b16 %v195
        %v248 = vunpack.c.h.b16 %v195
        %v249 = vunpack.c.l.b16 %v196
        %v250 = vunpack.c.h.b16 %v196
        %v251 = vunpack.c.l.b16 %v197
        %v252 = vunpack.c.h.b16 %v197
        %v253 = vunpack.c.l.b16 %v198
        %v254 = vunpack.c.h.b16 %v198
        %v255 = vunpack.c.l.b16 %v199
        %v256 = vunpack.c.h.b16 %v199
        %v257 = vunpack.c.l.b16 %v200
        %v258 = vunpack.c.h.b16 %v200
        %v259 = vunpack.c.l.b16 %v201
        %v260 = vunpack.c.h.b16 %v201
        %v261 = vunpack.c.l.b16 %v202
        %v262 = vunpack.c.h.b16 %v202
        %v263 = vpack.c.b16 %v251, %v247
        %v264 = vpack.c.b16 %v252, %v248
        %v265 = vpack.c.b16 %v253, %v249
        %v266 = vpack.c.b16 %v254, %v250
        %v267 = vpack.c.b16 %v259, %v255
        %v268 = vpack.c.b16 %v260, %v256
        %v269 = vpack.c.b16 %v261, %v257
        %v270 = vpack.c.b16 %v262, %v258
        %vm279 = vcmask 261120
        %v281 = vsel %vm279, %v194, 0
        %283 = vmatpush.bf16.msra.mxu0 0
        %284 = vmatpush.bf16.msra.mxu0 0
        %285 = vmatpush.bf16.msra.mxu0 0
        %286 = vmatpush.bf16.msra.mxu0 0
        %287 = vmatpush.bf16.msra.mxu0 0
        %288 = vmatpush.bf16.msra.mxu0 0
        %289 = vmatpush.bf16.msra.mxu0 %v267
        %290 = vmatpush.bf16.msra.mxu0 %v263
        %291 = vmatmul.bf16.gmra.mxu0 %v281
        %v292 = vpop.f32.mrf.mxu0
        %v293 = vadd.f32 0.0, %v292
        %v294 = vpop.f32.mrf.mxu0
        %295 = vdwg.mxu0
        %296 = vmatpush.bf16.msra.mxu0 0
        %297 = vmatpush.bf16.msra.mxu0 0
        %298 = vmatpush.bf16.msra.mxu0 0
        %299 = vmatpush.bf16.msra.mxu0 0
        %300 = vmatpush.bf16.msra.mxu0 0
        %301 = vmatpush.bf16.msra.mxu0 0
        %302 = vmatpush.bf16.msra.mxu0 %v268
        %303 = vmatpush.bf16.msra.mxu0 %v264
        %304 = vmatmul.bf16.gmra.mxu0 %v281
        %v305 = vpop.f32.mrf.mxu0
        %v306 = vadd.f32 0.0, %v305
        %v307 = vpop.f32.mrf.mxu0
        %308 = vdwg.mxu0
        %309 = vmatpush.bf16.msra.mxu0 0
        %310 = vmatpush.bf16.msra.mxu0 0
        %311 = vmatpush.bf16.msra.mxu0 0
        %312 = vmatpush.bf16.msra.mxu0 0
        %313 = vmatpush.bf16.msra.mxu0 0
        %314 = vmatpush.bf16.msra.mxu0 0
        %315 = vmatpush.bf16.msra.mxu0 %v269
        %316 = vmatpush.bf16.msra.mxu0 %v265
        %317 = vmatmul.bf16.gmra.mxu0 %v281
        %v318 = vpop.f32.mrf.mxu0
        %v319 = vadd.f32 0.0, %v318
        %v320 = vpop.f32.mrf.mxu0
        %321 = vdwg.mxu0
        %322 = vmatpush.bf16.msra.mxu0 0
        %323 = vmatpush.bf16.msra.mxu0 0
        %324 = vmatpush.bf16.msra.mxu0 0
        %325 = vmatpush.bf16.msra.mxu0 0
        %326 = vmatpush.bf16.msra.mxu0 0
        %327 = vmatpush.bf16.msra.mxu0 0
        %328 = vmatpush.bf16.msra.mxu0 %v270
        %329 = vmatpush.bf16.msra.mxu0 %v266
        %330 = vmatmul.bf16.gmra.mxu0 %v281
        %v331 = vpop.f32.mrf.mxu0
        %v332 = vadd.f32 0.0, %v331
        %v333 = vpop.f32.mrf.mxu0
        %334 = vdwg.mxu0
        %v335 = vmax.f32 %v293, %v306
        %336 = vmax.xlane.f32.xlu0 %v335
        %v337 = vpop.xlane.xlu0 %336
        %v338 = vsub.f32 %v293, %v337
        %v339 = vsub.f32 %v306, %v337
        %v340 = vmul.f32 %v338, 1.442695
        %v341 = vpow.pop %v340
        %v342 = vmul.f32 %v339, 1.442695
        %v343 = vpow.pop %v342
        %344 = vmatpush.msra.mxu0 %v218
        %345 = vmatpush.msra.mxu0 %v217
        %346 = vmatpush.msra.mxu0 %v216
        %347 = vmatpush.msra.mxu0 %v215
        %348 = vmatpush.msra.mxu0 %v214
        %349 = vmatpush.msra.mxu0 %v213
        %350 = vmatpush.msra.mxu0 %v212
        %351 = vmatpush.msra.mxu0 %v211
        %352 = vmatpush.msra.mxu0 %v210
        %353 = vmatpush.msra.mxu0 %v209
        %354 = vmatpush.msra.mxu0 %v208
        %355 = vmatpush.msra.mxu0 %v207
        %356 = vmatpush.msra.mxu0 %v206
        %357 = vmatpush.msra.mxu0 %v205
        %358 = vmatpush.msra.mxu0 %v204
        %359 = vmatpush.msra.mxu0 %v203
        %360 = vmatmul.f32.gmra.mxu0 %v341
        %v361 = vpop.f32.mrf.mxu0
        %v362 = vadd.f32 0.0, %v361
        %363 = vdwg.mxu0
        %364 = vmatpush.msra.mxu0 %v234
        %365 = vmatpush.msra.mxu0 %v233
        %366 = vmatpush.msra.mxu0 %v232
        %367 = vmatpush.msra.mxu0 %v231
        %368 = vmatpush.msra.mxu0 %v230
        %369 = vmatpush.msra.mxu0 %v229
        %370 = vmatpush.msra.mxu0 %v228
        %371 = vmatpush.msra.mxu0 %v227
        %372 = vmatpush.msra.mxu0 %v226
        %373 = vmatpush.msra.mxu0 %v225
        %374 = vmatpush.msra.mxu0 %v224
        %375 = vmatpush.msra.mxu0 %v223
        %376 = vmatpush.msra.mxu0 %v222
        %377 = vmatpush.msra.mxu0 %v221
        %378 = vmatpush.msra.mxu0 %v220
        %379 = vmatpush.msra.mxu0 %v219
        %380 = vmatmul.f32.gmra.mxu0 %v343
        %v381 = vpop.f32.mrf.mxu0
        %v382 = vadd.f32 %v362, %v381
        %383 = vdwg.mxu0
        %v384 = vrcp.pop %v382
        %386 = vset.pattern.permute.xlu0 8
        %387 = vperm.xlu0 %386, %v384
        %v388 = vpop.permute.xlu0 %387
        %v390 = vmul.f32 %v382, %v388
        %v391 = vmax.f32 %v319, %v332
        %392 = vmax.xlane.f32.xlu0 %v391
        %v393 = vpop.xlane.xlu0 %392
        %v394 = vsub.f32 %v319, %v393
        %v395 = vsub.f32 %v332, %v393
        %v396 = vmul.f32 %v394, 1.442695
        %v397 = vpow.pop %v396
        %v398 = vmul.f32 %v395, 1.442695
        %v399 = vpow.pop %v398
        %400 = vmatpush.msra.mxu0 %v218
        %401 = vmatpush.msra.mxu0 %v217
        %402 = vmatpush.msra.mxu0 %v216
        %403 = vmatpush.msra.mxu0 %v215
        %404 = vmatpush.msra.mxu0 %v214
        %405 = vmatpush.msra.mxu0 %v213
        %406 = vmatpush.msra.mxu0 %v212
        %407 = vmatpush.msra.mxu0 %v211
        %408 = vmatpush.msra.mxu0 %v210
        %409 = vmatpush.msra.mxu0 %v209
        %410 = vmatpush.msra.mxu0 %v208
        %411 = vmatpush.msra.mxu0 %v207
        %412 = vmatpush.msra.mxu0 %v206
        %413 = vmatpush.msra.mxu0 %v205
        %414 = vmatpush.msra.mxu0 %v204
        %415 = vmatpush.msra.mxu0 %v203
        %416 = vmatmul.f32.gmra.mxu0 %v397
        %v417 = vpop.f32.mrf.mxu0
        %v418 = vadd.f32 0.0, %v417
        %419 = vdwg.mxu0
        %420 = vmatpush.msra.mxu0 %v234
        %421 = vmatpush.msra.mxu0 %v233
        %422 = vmatpush.msra.mxu0 %v232
        %423 = vmatpush.msra.mxu0 %v231
        %424 = vmatpush.msra.mxu0 %v230
        %425 = vmatpush.msra.mxu0 %v229
        %426 = vmatpush.msra.mxu0 %v228
        %427 = vmatpush.msra.mxu0 %v227
        %428 = vmatpush.msra.mxu0 %v226
        %429 = vmatpush.msra.mxu0 %v225
        %430 = vmatpush.msra.mxu0 %v224
        %431 = vmatpush.msra.mxu0 %v223
        %432 = vmatpush.msra.mxu0 %v222
        %433 = vmatpush.msra.mxu0 %v221
        %434 = vmatpush.msra.mxu0 %v220
        %435 = vmatpush.msra.mxu0 %v219
        %436 = vmatmul.f32.gmra.mxu0 %v399
        %v437 = vpop.f32.mrf.mxu0
        %v438 = vadd.f32 %v418, %v437
        %439 = vdwg.mxu0
        %v440 = vrcp.pop %v438
        %442 = vset.pattern.permute.xlu0 8
        %443 = vperm.xlu0 %442, %v440
        %v444 = vpop.permute.xlu0 %443
        %v446 = vmul.f32 %v438, %v444
        %v447 = vsub.f32 1.0, %v446
        %v448 = vmul.f32 %v390, %v447
        %v449 = vsub.f32 1.0, %v390
        %v450 = vmul.f32 %v449, %v446
        %v451 = vadd.f32 %v448, %v450
        %v452 = vmax.f32 %v451, 1e-30
        %v453 = vlog2.pop %v452
        %v454 = vmul.f32 %v453, 0.6931472
        %v455 = vsub.f32 1.0, %v451
        %v456 = vmax.f32 %v455, 1e-30
        %v457 = vlog2.pop %v456
        %v458 = vmul.f32 %v457, 0.6931472
        %v459 = vsub.f32 %v454, %v458
        %461 = vrot.lane.b32.xlu0 %v458, 8
        %v462 = vpop.permute.xlu0 %461
        %vm464 = vcmask 64512
        %v465 = vsel %vm464, %v459, %v462
        %vm466 = vcmask 130048
        %v468 = vsel %vm466, %v465, 0
        %470 = vmatpush.msra.mxu0 0.0
        %471 = vmatpush.msra.mxu0 0.0
        %472 = vmatpush.msra.mxu0 0.0
        %473 = vmatpush.msra.mxu0 0.0
        %474 = vmatpush.msra.mxu0 0.0
        %475 = vmatpush.msra.mxu0 0.0
        %476 = vmatpush.msra.mxu0 0.0
        %477 = vmatpush.msra.mxu0 0.0
        %478 = vmatpush.msra.mxu0 0.0
        %479 = vmatpush.msra.mxu0 0.0
        %480 = vmatpush.msra.mxu0 0.0
        %481 = vmatpush.msra.mxu0 0.0
        %482 = vmatpush.msra.mxu0 0.0
        %483 = vmatpush.msra.mxu0 0.0
        %484 = vmatpush.msra.mxu0 %v237
        %485 = vmatpush.msra.mxu0 %v235
        %486 = vmatmul.f32.gmra.mxu0 %v468
        %v487 = vpop.f32.mrf.mxu0
        %v488 = vadd.f32 0.0, %v487
        %489 = vdwg.mxu0
        %490 = vmatpush.msra.mxu0 0.0
        %491 = vmatpush.msra.mxu0 0.0
        %492 = vmatpush.msra.mxu0 0.0
        %493 = vmatpush.msra.mxu0 0.0
        %494 = vmatpush.msra.mxu0 0.0
        %495 = vmatpush.msra.mxu0 0.0
        %496 = vmatpush.msra.mxu0 0.0
        %497 = vmatpush.msra.mxu0 0.0
        %498 = vmatpush.msra.mxu0 0.0
        %499 = vmatpush.msra.mxu0 0.0
        %500 = vmatpush.msra.mxu0 0.0
        %501 = vmatpush.msra.mxu0 0.0
        %502 = vmatpush.msra.mxu0 0.0
        %503 = vmatpush.msra.mxu0 0.0
        %504 = vmatpush.msra.mxu0 %v238
        %505 = vmatpush.msra.mxu0 %v236
        %506 = vmatmul.f32.gmra.mxu0 %v468
        %v507 = vpop.f32.mrf.mxu0
        %v508 = vadd.f32 0.0, %v507
        %509 = vdwg.mxu0
        %510 = vst [vmem:[%s188] sm:$0xff] %v488
        %511 = vst [vmem:[%s188 + $0x8] sm:$0xff] %v508
        %s512 = sand.u32 %s115, 1
        %s513 = scalar_lea.sflag [#allocation3], %s512
        %s514 = sand.u32 %s115, 1
        %s515 = smul.addr %s514, 16
        %s516 = scalar_lea.vmem [#allocation2], %s515
        // Predicated region
        $region37: #{soft_xor_forward.1} parent=35 // pred_check
          %p517 = pneg %p125
        $region38: #{soft_xor_forward.1} parent=35 // pred_check_branch
          %519 = sbr.rel (%p517) target = $region40
        $region39: #{soft_xor_forward.1} parent=35 // pred_region
          %521 = vsyncadd %s513, 0
          %s522 = smul.addr %s18, 2
          %s523 = smul.addr %s522, 8
          %s524 = scalar_lea.hbm %s4, %s523
          %s526 = sshll.u32 %s516, 4
          %s527 = int_to_ptr.vmem [resolvable:$true] %s526
          %s528 = sshll.u32 %s524, 4
          %s529 = int_to_ptr.hbm [resolvable:$true] %s528
          %531 = dma.vmem_to_hbm [thread:$0]  %s527, 256, %s529, %s513
        $region40: #{soft_xor_forward.1} parent=35 // pred_fallthru
          _
      $region36: #{soft_xor_forward.1} parent=5 // pred_fallthru
        _
      %p532 = scmp.le.s32.totalorder 2, %s13
      // Predicated region
      $region41: #{soft_xor_forward.1} parent=5 // pred_check
        %p533 = pneg %p532
      $region42: #{soft_xor_forward.1} parent=5 // pred_check_branch
        %535 = sbr.rel (%p533) target = $region44
      $region43: #{soft_xor_forward.1} parent=5 // pred_region
        %s536 = ssub.s32 %s13, 2
        // Predicated region
        $region45: #{soft_xor_forward.1} parent=43 // pred_check
          %p537 = pneg %p131
        $region46: #{soft_xor_forward.1} parent=43 // pred_check_branch
          %539 = sbr.rel (%p537) target = $region48
        $region47: #{soft_xor_forward.1} parent=43 // pred_region
          %s540 = sand.u32 %s116, 1
          %s541 = scalar_lea.sflag [#allocation3], %s540
          %s542 = sand.u32 %s116, 1
          %s543 = smul.addr %s542, 16
          %s544 = scalar_lea.vmem [#allocation2], %s543
          %546 = dma.done %s541, 256
        $region48: #{soft_xor_forward.1} parent=43 // pred_fallthru
          _
      $region44: #{soft_xor_forward.1} parent=5 // pred_fallthru
        _
    $region6: #{soft_xor_forward.1} parent=1 // loop_footer
      %s17 = sadd.s32 1, %s13
    $region7: #{soft_xor_forward.1} parent=1 // loop_footer_branch
      %12 = sbr.rel target = $region3
    $region8: #{soft_xor_forward.1} parent=1 // loop_exit
      _
    %547 = vsyncpa [#allocation3], 1
    %s548 = scalar_lea.sflag [#allocation3], 1
    %549 = vsyncpa %s548, 1

</llo_original>
